<compile_context>
chip_gen: v7x
topology: tpu7x:2x2x1
jax: 0.10.0
libtpu: 0.0.40
codegen_flags: <defaults>
</compile_context>

<pallas_src>
import jax
import jax.numpy as jnp
from jax.experimental import pallas as pl
from jax.experimental.pallas import tpu as pltpu

HIDDEN = 256


def _round_up(x, m):
    return ((x + m - 1) // m) * m


def _actor_kernel(ma_ref, s_ref, w1_ref, b1_ref, w2_ref, b2_ref, w3_ref,
                  b3_ref, o_ref):
    max_action = ma_ref[0]

    # Layer 1: Linear(state_dim -> 256) + ReLU (bf16 MXU, f32 accumulate).
    x = s_ref[...].astype(jnp.bfloat16)
    h1 = jnp.dot(x, w1_ref[...], preferred_element_type=jnp.float32)
    h1 = jnp.maximum(h1 + b1_ref[...], 0.0)

    # Layer 2: Linear(256 -> 256) + ReLU.
    h2 = jnp.dot(h1.astype(jnp.bfloat16), w2_ref[...],
                 preferred_element_type=jnp.float32)
    h2 = jnp.maximum(h2 + b2_ref[...], 0.0)

    # Layer 3: Linear(256 -> action_dim), then max_action * tanh (f32 epilogue).
    h3 = jnp.dot(h2.astype(jnp.bfloat16), w3_ref[...],
                 preferred_element_type=jnp.float32)
    h3 = h3 + b3_ref[...]
    o_ref[...] = (max_action * jnp.tanh(h3)).astype(o_ref.dtype)


def prepare_actor_params(params):
    """One-time prep: bf16 weights for the MXU, f32 biases as (1, N) rows.

    Call once; reuse the result across forward calls so no per-call
    pad/cast HBM passes are issued.
    """
    return {
        "w1": params["w1"].astype(jnp.bfloat16),
        "w2": params["w2"].astype(jnp.bfloat16),
        "w3": params["w3"].astype(jnp.bfloat16),
        "b1": params["b1"].reshape(1, -1).astype(jnp.float32),
        "b2": params["b2"].reshape(1, -1).astype(jnp.float32),
        "b3": params["b3"].reshape(1, -1).astype(jnp.float32),
    }


def actor_forward(state, prepared, max_action):
    """state: (B, state_dim) f32. prepared: output of prepare_actor_params."""
    w1, w2, w3 = prepared["w1"], prepared["w2"], prepared["w3"]
    b1, b2, b3 = prepared["b1"], prepared["b2"], prepared["b3"]

    B, state_dim = state.shape
    action_dim = w3.shape[1]

    # Batch tiling: up to 512 rows/tile (amortizes per-step overhead; VMEM
    # footprint at 512 is ~1.5 MB, far below every generation's budget).
    tile_b = min(512, _round_up(B, 8))
    b_pad = _round_up(B, tile_b)
    if b_pad != B:
        state = jnp.pad(state, ((0, b_pad - B), (0, 0)))

    ma = jnp.asarray(max_action, jnp.float32).reshape(1)

    grid = (b_pad // tile_b,)

    # True (unpadded) work for the scheduler hint.
    flops = 2 * B * (state_dim * HIDDEN + HIDDEN * HIDDEN + HIDDEN * action_dim)
    bytes_accessed = (b_pad * state_dim * 4
                      + (w1.size + w2.size + w3.size) * 2
                      + (b1.size + b2.size + b3.size) * 4
                      + b_pad * action_dim * 4)

    # Weight/bias blocks stay resident in VMEM across the batch grid.
    resident = lambda a: pl.BlockSpec(a.shape, lambda i: (0, 0))

    out = pl.pallas_call(
        _actor_kernel,
        out_shape=jax.ShapeDtypeStruct((b_pad, action_dim), jnp.float32),
        grid=grid,
        in_specs=[
            pl.BlockSpec(memory_space=pltpu.MemorySpace.SMEM),  # max_action
            pl.BlockSpec((tile_b, state_dim), lambda i: (i, 0)),  # state tile
            resident(w1), resident(b1),
            resident(w2), resident(b2),
            resident(w3), resident(b3),
        ],
        out_specs=pl.BlockSpec((tile_b, action_dim), lambda i: (i, 0)),
        compiler_params=pltpu.CompilerParams(
            dimension_semantics=("parallel",)),
        cost_estimate=pl.CostEstimate(
            flops=flops,
            transcendentals=B * action_dim,
            bytes_accessed=bytes_accessed),
    )(ma, state, w1, b1, w2, b2, w3, b3)

    return out[:B]


def init_actor_params(key, state_dim, action_dim, hidden=HIDDEN):
    """Deterministic synthetic init (uniform like PyTorch's default Linear init)."""
    ks = jax.random.split(key, 6)

    def linear(kw, kb, fan_in, fan_out):
        bound = 1.0 / jnp.sqrt(fan_in)
        w = jax.random.uniform(kw, (fan_in, fan_out), jnp.float32, -bound, bound)
        b = jax.random.uniform(kb, (fan_out,), jnp.float32, -bound, bound)
        return w, b

    w1, b1 = linear(ks[0], ks[1], state_dim, hidden)
    w2, b2 = linear(ks[2], ks[3], hidden, hidden)
    w3, b3 = linear(ks[4], ks[5], hidden, action_dim)
    return {"w1": w1, "b1": b1, "w2": w2, "b2": b2, "w3": w3, "b3": b3}


def actor_forward_ref(state, params, max_action):
    """Pure-JAX f32 reference for correctness check."""
    a = jnp.maximum(state @ params["w1"] + params["b1"], 0.0)
    a = jnp.maximum(a @ params["w2"] + params["b2"], 0.0)
    return max_action * jnp.tanh(a @ params["w3"] + params["b3"])


if __name__ == "__main__":
    key = jax.random.PRNGKey(0)
    k_state, k_params = jax.random.split(key)

    batch = 8
    state_dim = 16
    action_dim = 8
    max_action = 2.0

    state = jax.random.normal(k_state, (batch, state_dim), jnp.float32)
    params = init_actor_params(k_params, state_dim, action_dim)

    prepared = prepare_actor_params(params)  # one-time param prep
    out = actor_forward(state, prepared, max_action)
    out = jax.block_until_ready(out)

    ref = actor_forward_ref(state, params, max_action)
    assert out.shape == (batch, action_dim)
    # bf16 matmul inputs -> loosened tolerance vs the f32 reference.
    assert jnp.allclose(out, ref, atol=5e-2, rtol=5e-2), \
        float(jnp.max(jnp.abs(out - ref)))

    print("KERNEL_OK")
</pallas_src>

<mosaic_0001>
module attributes {stable_mosaic.version = 11 : i64} {
  func.func @_actor_kernel(%arg0: i32, %arg1: memref<1xf32, #tpu.memory_space<smem>>, %arg2: memref<8x16xf32, #tpu.memory_space<vmem>>, %arg3: memref<16x256xbf16, #tpu.memory_space<vmem>>, %arg4: memref<1x256xf32, #tpu.memory_space<vmem>>, %arg5: memref<256x256xbf16, #tpu.memory_space<vmem>>, %arg6: memref<1x256xf32, #tpu.memory_space<vmem>>, %arg7: memref<256x8xbf16, #tpu.memory_space<vmem>>, %arg8: memref<1x8xf32, #tpu.memory_space<vmem>>, %arg9: memref<8x8xf32, #tpu.memory_space<vmem>>) attributes {dimension_semantics = [#tpu.dimension_semantics<parallel>], iteration_bounds = array<i64: 1>, scalar_prefetch = 0 : i64, scratch_operands = 0 : i64, tpu.core_type = #tpu.core_type<tc>, window_params = [{transform_indices = @transform_0, window_bounds = array<i64: 1>}, {transform_indices = @transform_1, window_bounds = array<i64: 8, 16>}, {pipeline_mode = #tpu.pipeline_mode<synchronous>, transform_indices = @transform_2, window_bounds = array<i64: 16, 256>}, {pipeline_mode = #tpu.pipeline_mode<synchronous>, transform_indices = @transform_3, window_bounds = array<i64: 1, 256>}, {pipeline_mode = #tpu.pipeline_mode<synchronous>, transform_indices = @transform_4, window_bounds = array<i64: 256, 256>}, {pipeline_mode = #tpu.pipeline_mode<synchronous>, transform_indices = @transform_5, window_bounds = array<i64: 1, 256>}, {pipeline_mode = #tpu.pipeline_mode<synchronous>, transform_indices = @transform_6, window_bounds = array<i64: 256, 8>}, {pipeline_mode = #tpu.pipeline_mode<synchronous>, transform_indices = @transform_7, window_bounds = array<i64: 1, 8>}, {transform_indices = @transform_8, window_bounds = array<i64: 8, 8>}]} {
    %c0 = arith.constant 0 : index
    %0 = memref.load %arg1[%c0] : memref<1xf32, #tpu.memory_space<smem>>
    %c0_0 = arith.constant 0 : index
    %c0_1 = arith.constant 0 : index
    %1 = vector.load %arg2[%c0_0, %c0_1] : memref<8x16xf32, #tpu.memory_space<vmem>>, vector<8x16xf32>
    %2 = arith.truncf %1 : vector<8x16xf32> to vector<8x16xbf16>
    %c0_2 = arith.constant 0 : index
    %c0_3 = arith.constant 0 : index
    %3 = vector.load %arg3[%c0_2, %c0_3] : memref<16x256xbf16, #tpu.memory_space<vmem>>, vector<16x256xbf16>
    %cst = arith.constant dense<0.000000e+00> : vector<8x256xf32>
    %4 = tpu.matmul %2, %3, %cst {dimension_numbers = #tpu.dot_dimension_numbers<[1], [0], [0], [1], [0, 0, 1, 1], [], []>} : vector<8x16xbf16>, vector<16x256xbf16>, vector<8x256xf32> -> vector<8x256xf32>
    %c0_4 = arith.constant 0 : index
    %c0_5 = arith.constant 0 : index
    %5 = vector.load %arg4[%c0_4, %c0_5] : memref<1x256xf32, #tpu.memory_space<vmem>>, vector<1x256xf32>
    %6 = vector.broadcast %5 : vector<1x256xf32> to vector<8x256xf32>
    %7 = arith.addf %4, %6 : vector<8x256xf32>
    %cst_6 = arith.constant 0.000000e+00 : f32
    %8 = vector.broadcast %cst_6 : f32 to vector<8x256xf32>
    %9 = arith.maximumf %7, %8 : vector<8x256xf32>
    %10 = arith.truncf %9 : vector<8x256xf32> to vector<8x256xbf16>
    %c0_7 = arith.constant 0 : index
    %c0_8 = arith.constant 0 : index
    %11 = vector.load %arg5[%c0_7, %c0_8] : memref<256x256xbf16, #tpu.memory_space<vmem>>, vector<256x256xbf16>
    %cst_9 = arith.constant dense<0.000000e+00> : vector<8x256xf32>
    %12 = tpu.matmul %10, %11, %cst_9 {dimension_numbers = #tpu.dot_dimension_numbers<[1], [0], [0], [1], [0, 0, 1, 1], [], []>} : vector<8x256xbf16>, vector<256x256xbf16>, vector<8x256xf32> -> vector<8x256xf32>
    %c0_10 = arith.constant 0 : index
    %c0_11 = arith.constant 0 : index
    %13 = vector.load %arg6[%c0_10, %c0_11] : memref<1x256xf32, #tpu.memory_space<vmem>>, vector<1x256xf32>
    %14 = vector.broadcast %13 : vector<1x256xf32> to vector<8x256xf32>
    %15 = arith.addf %12, %14 : vector<8x256xf32>
    %cst_12 = arith.constant 0.000000e+00 : f32
    %16 = vector.broadcast %cst_12 : f32 to vector<8x256xf32>
    %17 = arith.maximumf %15, %16 : vector<8x256xf32>
    %18 = arith.truncf %17 : vector<8x256xf32> to vector<8x256xbf16>
    %c0_13 = arith.constant 0 : index
    %c0_14 = arith.constant 0 : index
    %19 = vector.load %arg7[%c0_13, %c0_14] : memref<256x8xbf16, #tpu.memory_space<vmem>>, vector<256x8xbf16>
    %cst_15 = arith.constant dense<0.000000e+00> : vector<8x8xf32>
    %20 = tpu.matmul %18, %19, %cst_15 {dimension_numbers = #tpu.dot_dimension_numbers<[1], [0], [0], [1], [0, 0, 1, 1], [], []>} : vector<8x256xbf16>, vector<256x8xbf16>, vector<8x8xf32> -> vector<8x8xf32>
    %c0_16 = arith.constant 0 : index
    %c0_17 = arith.constant 0 : index
    %21 = vector.load %arg8[%c0_16, %c0_17] : memref<1x8xf32, #tpu.memory_space<vmem>>, vector<1x8xf32>
    %22 = vector.broadcast %21 : vector<1x8xf32> to vector<8x8xf32>
    %23 = arith.addf %20, %22 : vector<8x8xf32>
    %24 = math.tanh %23 : vector<8x8xf32>
    %25 = vector.broadcast %0 : f32 to vector<8x8xf32>
    %26 = arith.mulf %25, %24 : vector<8x8xf32>
    %c0_18 = arith.constant 0 : index
    %c0_19 = arith.constant 0 : index
    %27 = vector.load %arg9[%c0_18, %c0_19] : memref<8x8xf32, #tpu.memory_space<vmem>>, vector<8x8xf32>
    tpu.vector_store %arg9[%c0_18, %c0_19], %26 {strides = array<i32>} : memref<8x8xf32, #tpu.memory_space<vmem>>, vector<8x8xf32>,
    return
  }
  func.func @transform_0(%arg0: i32) -> i32 {
    %c0_i32 = arith.constant 0 : i32
    %c0_i32_0 = arith.constant 0 : i32
    return %c0_i32 : i32
  }
  func.func @transform_1(%arg0: i32) -> (i32, i32) {
    %c0_i32 = arith.constant 0 : i32
    %c0_i32_0 = arith.constant 0 : i32
    return %arg0, %c0_i32 : i32, i32
  }
  func.func @transform_2(%arg0: i32) -> (i32, i32) {
    %c0_i32 = arith.constant 0 : i32
    %c0_i32_0 = arith.constant 0 : i32
    %c0_i32_1 = arith.constant 0 : i32
    return %c0_i32, %c0_i32_0 : i32, i32
  }
  func.func @transform_3(%arg0: i32) -> (i32, i32) {
    %c0_i32 = arith.constant 0 : i32
    %c0_i32_0 = arith.constant 0 : i32
    %c0_i32_1 = arith.constant 0 : i32
    return %c0_i32, %c0_i32_0 : i32, i32
  }
  func.func @transform_4(%arg0: i32) -> (i32, i32) {
    %c0_i32 = arith.constant 0 : i32
    %c0_i32_0 = arith.constant 0 : i32
    %c0_i32_1 = arith.constant 0 : i32
    return %c0_i32, %c0_i32_0 : i32, i32
  }
  func.func @transform_5(%arg0: i32) -> (i32, i32) {
    %c0_i32 = arith.constant 0 : i32
    %c0_i32_0 = arith.constant 0 : i32
    %c0_i32_1 = arith.constant 0 : i32
    return %c0_i32, %c0_i32_0 : i32, i32
  }
  func.func @transform_6(%arg0: i32) -> (i32, i32) {
    %c0_i32 = arith.constant 0 : i32
    %c0_i32_0 = arith.constant 0 : i32
    %c0_i32_1 = arith.constant 0 : i32
    return %c0_i32, %c0_i32_0 : i32, i32
  }
  func.func @transform_7(%arg0: i32) -> (i32, i32) {
    %c0_i32 = arith.constant 0 : i32
    %c0_i32_0 = arith.constant 0 : i32
    %c0_i32_1 = arith.constant 0 : i32
    return %c0_i32, %c0_i32_0 : i32, i32
  }
  func.func @transform_8(%arg0: i32) -> (i32, i32) {
    %c0_i32 = arith.constant 0 : i32
    %c0_i32_0 = arith.constant 0 : i32
    return %arg0, %c0_i32 : i32, i32
  }
}

</mosaic_0001>

<llo_original>
// kernel: tpu_custom_call.1
$region0: #{tpu_custom_call.1}
  #allocation0 [shape = 'u32[]', space=smem, size = 0x4, offset = 0x4, fixed_abs, tag = 'smem constant byte address 0x4 - core index']
  #allocation1 [shape = 'u32[144,128]{1,0:T(1,128)}', space=vmem, size = 0x12000, scoped, tag = 'internal scratch']
  #allocation2 [shape = 'f32[1]{0:T(128)S(6)}', space=smem, size = 0x200, scoped, tag = 'scoped memory for tpu_custom_call.1']
  %s0 = inlined_call_operand.<no memory space> [shape: f32[1], index: 0, kind: input, shape index: {}]
  %s1 = inlined_call_operand.vmem [shape: f32[8,16], index: 1, kind: input, shape index: {}]
  %s2 = inlined_call_operand.vmem [shape: bf16[16,256], index: 2, kind: input, shape index: {}]
  %s3 = inlined_call_operand.vmem [shape: f32[1,256], index: 3, kind: input, shape index: {}]
  %s4 = inlined_call_operand.hbm [shape: bf16[256,256], index: 4, kind: input, shape index: {}]
  %s5 = inlined_call_operand.vmem [shape: f32[1,256], index: 5, kind: input, shape index: {}]
  %s6 = inlined_call_operand.vmem [shape: bf16[256,8], index: 6, kind: input, shape index: {}]
  %s7 = inlined_call_operand.vmem [shape: f32[1,8], index: 7, kind: input, shape index: {}]
  %s8 = inlined_call_operand.hbm [shape: f32[8,8], index: 8, kind: output, shape index: {}]
  %s9 = sld [smem:[#allocation0]]
  $region46: #{tpu_custom_call.1} parent=0
    _
  %s11 = ssub.s32 1, %s9
  %s12 = scalar_select 0, %s11, %s9
  %13 = sst [smem:[#allocation2]] %s0
  $region1: #{tpu_custom_call.1} parent=0
    #allocation3 [shape = 'u8[131072]{0}', space=vmem, size = 0x20000, scoped, tag = 'input window, operand 4, single buffered']
    #allocation4 [shape = 's32[1]{0}', space=sflag, size = 0x4, scoped, tag = 'scoped memory for tpu_custom_call.1']
    #allocation5 [shape = 's32[1]{0}', space=sflag, size = 0x4, scoped, tag = 'scoped memory for tpu_custom_call.1']
    #allocation6 [shape = 'u8[4096]{0}', space=vmem, size = 0x1000, scoped, tag = 'output window, operand 0, single buffered']
    %14 = vsyncpa [#allocation4], 0
    %15 = vsyncpa [#allocation5], 0
    // Predicated region
    $region2: #{tpu_custom_call.1} parent=1 // pred_check
      _
    $region3: #{tpu_custom_call.1} parent=1 // pred_check_branch
      %17 = sbr.rel (0) target = $region5
    $region4: #{tpu_custom_call.1} parent=1 // pred_region
      _
    $region5: #{tpu_custom_call.1} parent=1 // pred_fallthru
      _
    // Predicated region
    $region6: #{tpu_custom_call.1} parent=1 // pred_check
      _
    $region7: #{tpu_custom_call.1} parent=1 // pred_check_branch
      %19 = sbr.rel (0) target = $region9
    $region8: #{tpu_custom_call.1} parent=1 // pred_region
      _
    $region9: #{tpu_custom_call.1} parent=1 // pred_fallthru
      _
    // Predicated region
    $region10: #{tpu_custom_call.1} parent=1 // pred_check
      _
    $region11: #{tpu_custom_call.1} parent=1 // pred_check_branch
      %21 = sbr.rel (0) target = $region13
    $region12: #{tpu_custom_call.1} parent=1 // pred_region
      _
    $region13: #{tpu_custom_call.1} parent=1 // pred_fallthru
      _
    // Predicated region
    $region14: #{tpu_custom_call.1} parent=1 // pred_check
      _
    $region15: #{tpu_custom_call.1} parent=1 // pred_check_branch
      %23 = sbr.rel (0) target = $region17
    $region16: #{tpu_custom_call.1} parent=1 // pred_region
      _
    $region17: #{tpu_custom_call.1} parent=1 // pred_fallthru
      _
    // Predicated region
    $region18: #{tpu_custom_call.1} parent=1 // pred_check
      _
    $region19: #{tpu_custom_call.1} parent=1 // pred_check_branch
      %25 = sbr.rel (0) target = $region21
    $region20: #{tpu_custom_call.1} parent=1 // pred_region
      %s27 = ssub.s32 4096, 4096
      %28 = vsyncadd [#allocation4], %s27
      %s29 = sshll.u32 [#allocation3], 4
      %s30 = int_to_ptr.vmem [resolvable:$true] %s29
      %35 = dma.hbm_to_vmem [thread:$0]  %s4, 4096, %s30, [#allocation4], 128, 128, 8
    $region21: #{tpu_custom_call.1} parent=1 // pred_fallthru
      _
    // Predicated region
    $region22: #{tpu_custom_call.1} parent=1 // pred_check
      _
    $region23: #{tpu_custom_call.1} parent=1 // pred_check_branch
      %37 = sbr.rel (0) target = $region25
    $region24: #{tpu_custom_call.1} parent=1 // pred_region
      _
    $region25: #{tpu_custom_call.1} parent=1 // pred_fallthru
      _
    // Predicated region
    $region26: #{tpu_custom_call.1} parent=1 // pred_check
      _
    $region27: #{tpu_custom_call.1} parent=1 // pred_check_branch
      %39 = sbr.rel (0) target = $region29
    $region28: #{tpu_custom_call.1} parent=1 // pred_region
      _
    $region29: #{tpu_custom_call.1} parent=1 // pred_fallthru
      _
    // Predicated region
    $region30: #{tpu_custom_call.1} parent=1 // pred_check
      _
    $region31: #{tpu_custom_call.1} parent=1 // pred_check_branch
      %41 = sbr.rel (0) target = $region33
    $region32: #{tpu_custom_call.1} parent=1 // pred_region
      _
    $region33: #{tpu_custom_call.1} parent=1 // pred_fallthru
      _
    // Predicated region
    $region34: #{tpu_custom_call.1} parent=1 // pred_check
      _
    $region35: #{tpu_custom_call.1} parent=1 // pred_check_branch
      %43 = sbr.rel (0) target = $region37
    $region36: #{tpu_custom_call.1} parent=1 // pred_region
      %44 = dma.done [#allocation4], 4096
    $region37: #{tpu_custom_call.1} parent=1 // pred_fallthru
      _
    %s46 = sld [smem:[#allocation2]]
    %v47 = vld [vmem:[%s1] sm:$0xff]
    %v48 = vpack.c.bf16 %v47, %v47
    %v49 = vld [vmem:[%s2] sm:$0xff]
    %v50 = vld [vmem:[%s2 + $0x8] sm:$0xff]
    %v51 = vld [vmem:[%s3] sm:$0x3]
    %v53 = vlaneseq
    %v54 = vshrl.u32 %v53, 7
    %v55 = vsub.s32 0, %v54
    %v56 = vrot.slane %v51, %v55
    %v57 = vlaneseq
    %v58 = vshrl.u32 %v57, 7
    %v59 = vsub.s32 1, %v58
    %v60 = vrot.slane %v51, %v59
    %v65 = vunpack.c.l.b16 %v49
    %v66 = vunpack.c.h.b16 %v49
    %v67 = vunpack.c.l.b16 %v50
    %v68 = vunpack.c.h.b16 %v50
    %v69 = vpack.c.b16 %v67, %v65
    %v70 = vpack.c.b16 %v68, %v66
    %vm73 = vcmask 130048
    %v75 = vsel %vm73, %v48, 0
    %77 = vmatprep.subr.bf16.mxu0 %v70
    %78 = vmatpush1.bf16.msra.mxu0 %v69
    %79 = vmatprep.subr.bf16.mxu0 0
    %80 = vmatpush1.bf16.msra.mxu0 0
    %81 = vmatprep.subr.bf16.mxu0 0
    %82 = vmatpush1.bf16.msra.mxu0 0
    %83 = vmatprep.subr.bf16.mxu0 0
    %84 = vmatpush1.bf16.msra.mxu0 0
    %85 = vmatprep.subr.bf16.mxu0 0
    %86 = vmatpush1.bf16.msra.mxu0 0
    %87 = vmatprep.subr.bf16.mxu0 0
    %88 = vmatpush1.bf16.msra.mxu0 0
    %89 = vmatprep.subr.bf16.mxu0 0
    %90 = vmatpush1.bf16.msra.mxu0 0
    %91 = vmatprep.subr.bf16.mxu0 0
    %92 = vmatpush1.bf16.msra.mxu0 0
    %93 = vmatprep.subr.bf16.mxu0 0
    %94 = vmatpush1.bf16.msra.mxu0 0
    %95 = vmatprep.subr.bf16.mxu0 0
    %96 = vmatpush1.bf16.msra.mxu0 0
    %97 = vmatprep.subr.bf16.mxu0 0
    %98 = vmatpush1.bf16.msra.mxu0 0
    %99 = vmatprep.subr.bf16.mxu0 0
    %100 = vmatpush1.bf16.msra.mxu0 0
    %101 = vmatprep.subr.bf16.mxu0 0
    %102 = vmatpush1.bf16.msra.mxu0 0
    %103 = vmatprep.subr.bf16.mxu0 0
    %104 = vmatpush1.bf16.msra.mxu0 0
    %105 = vmatprep.subr.bf16.mxu0 0
    %106 = vmatpush1.bf16.msra.mxu0 0
    %107 = vmatprep.subr.bf16.mxu0 0
    %108 = vmatpush1.bf16.msra.mxu0 0
    %109 = vmatprep.mubr.bf16.mxu0 0
    %110 = vmatmul.mubr.bf16.gmra.mrb[0].mxu0 %v75
    %v111 = vpop.f32.mrb[0].mxu0
    %v112 = vadd.f32 %v56, %v111
    %v113 = vpop.f32.mrb[0].mxu0
    %v114 = vadd.f32 %v60, %v113
    %v115 = vpop.f32.mrb[0].mxu0
    %v116 = vpop.f32.mrb[0].mxu0
    %117 = vdwg.mxu0
    %v118 = vmax.f32 %v112, 0.0
    %v119 = vmax.f32 %v114, 0.0
    %v120 = vpack.c.bf16 %v118, %v118
    %v121 = vpack.c.bf16 %v119, %v119
    %v122 = vld [vmem:[#allocation3] sm:$0xff]
    %v123 = vld [vmem:[#allocation3 + $0x8] sm:$0xff]
    %v124 = vld [vmem:[#allocation3 + $0x10] sm:$0xff]
    %v125 = vld [vmem:[#allocation3 + $0x18] sm:$0xff]
    %v126 = vld [vmem:[#allocation3 + $0x20] sm:$0xff]
    %v127 = vld [vmem:[#allocation3 + $0x28] sm:$0xff]
    %v128 = vld [vmem:[#allocation3 + $0x30] sm:$0xff]
    %v129 = vld [vmem:[#allocation3 + $0x38] sm:$0xff]
    %v130 = vld [vmem:[#allocation3 + $0x40] sm:$0xff]
    %v131 = vld [vmem:[#allocation3 + $0x48] sm:$0xff]
    %v132 = vld [vmem:[#allocation3 + $0x50] sm:$0xff]
    %v133 = vld [vmem:[#allocation3 + $0x58] sm:$0xff]
    %v134 = vld [vmem:[#allocation3 + $0x60] sm:$0xff]
    %v135 = vld [vmem:[#allocation3 + $0x68] sm:$0xff]
    %v136 = vld [vmem:[#allocation3 + $0x70] sm:$0xff]
    %v137 = vld [vmem:[#allocation3 + $0x78] sm:$0xff]
    %v138 = vld [vmem:[#allocation3 + $0x80] sm:$0xff]
    %v139 = vld [vmem:[#allocation3 + $0x88] sm:$0xff]
    %v140 = vld [vmem:[#allocation3 + $0x90] sm:$0xff]
    %v141 = vld [vmem:[#allocation3 + $0x98] sm:$0xff]
    %v142 = vld [vmem:[#allocation3 + $0xa0] sm:$0xff]
    %v143 = vld [vmem:[#allocation3 + $0xa8] sm:$0xff]
    %v144 = vld [vmem:[#allocation3 + $0xb0] sm:$0xff]
    %v145 = vld [vmem:[#allocation3 + $0xb8] sm:$0xff]
    %v146 = vld [vmem:[#allocation3 + $0xc0] sm:$0xff]
    %v147 = vld [vmem:[#allocation3 + $0xc8] sm:$0xff]
    %v148 = vld [vmem:[#allocation3 + $0xd0] sm:$0xff]
    %v149 = vld [vmem:[#allocation3 + $0xd8] sm:$0xff]
    %v150 = vld [vmem:[#allocation3 + $0xe0] sm:$0xff]
    %v151 = vld [vmem:[#allocation3 + $0xe8] sm:$0xff]
    %v152 = vld [vmem:[#allocation3 + $0xf0] sm:$0xff]
    %v153 = vld [vmem:[#allocation3 + $0xf8] sm:$0xff]
    %v154 = vld [vmem:[%s5] sm:$0x3]
    %v156 = vlaneseq
    %v157 = vshrl.u32 %v156, 7
    %v158 = vsub.s32 0, %v157
    %v159 = vrot.slane %v154, %v158
    %v160 = vlaneseq
    %v161 = vshrl.u32 %v160, 7
    %v162 = vsub.s32 1, %v161
    %v163 = vrot.slane %v154, %v162
    %v198 = vunpack.c.l.b16 %v122
    %v199 = vunpack.c.h.b16 %v122
    %v200 = vunpack.c.l.b16 %v123
    %v201 = vunpack.c.h.b16 %v123
    %v202 = vunpack.c.l.b16 %v124
    %v203 = vunpack.c.h.b16 %v124
    %v204 = vunpack.c.l.b16 %v125
    %v205 = vunpack.c.h.b16 %v125
    %v206 = vunpack.c.l.b16 %v126
    %v207 = vunpack.c.h.b16 %v126
    %v208 = vunpack.c.l.b16 %v127
    %v209 = vunpack.c.h.b16 %v127
    %v210 = vunpack.c.l.b16 %v128
    %v211 = vunpack.c.h.b16 %v128
    %v212 = vunpack.c.l.b16 %v129
    %v213 = vunpack.c.h.b16 %v129
    %v214 = vunpack.c.l.b16 %v130
    %v215 = vunpack.c.h.b16 %v130
    %v216 = vunpack.c.l.b16 %v131
    %v217 = vunpack.c.h.b16 %v131
    %v218 = vunpack.c.l.b16 %v132
    %v219 = vunpack.c.h.b16 %v132
    %v220 = vunpack.c.l.b16 %v133
    %v221 = vunpack.c.h.b16 %v133
    %v222 = vunpack.c.l.b16 %v134
    %v223 = vunpack.c.h.b16 %v134
    %v224 = vunpack.c.l.b16 %v135
    %v225 = vunpack.c.h.b16 %v135
    %v226 = vunpack.c.l.b16 %v136
    %v227 = vunpack.c.h.b16 %v136
    %v228 = vunpack.c.l.b16 %v137
    %v229 = vunpack.c.h.b16 %v137
    %v230 = vunpack.c.l.b16 %v138
    %v231 = vunpack.c.h.b16 %v138
    %v232 = vunpack.c.l.b16 %v139
    %v233 = vunpack.c.h.b16 %v139
    %v234 = vunpack.c.l.b16 %v140
    %v235 = vunpack.c.h.b16 %v140
    %v236 = vunpack.c.l.b16 %v141
    %v237 = vunpack.c.h.b16 %v141
    %v238 = vunpack.c.l.b16 %v142
    %v239 = vunpack.c.h.b16 %v142
    %v240 = vunpack.c.l.b16 %v143
    %v241 = vunpack.c.h.b16 %v143
    %v242 = vunpack.c.l.b16 %v144
    %v243 = vunpack.c.h.b16 %v144
    %v244 = vunpack.c.l.b16 %v145
    %v245 = vunpack.c.h.b16 %v145
    %v246 = vunpack.c.l.b16 %v146
    %v247 = vunpack.c.h.b16 %v146
    %v248 = vunpack.c.l.b16 %v147
    %v249 = vunpack.c.h.b16 %v147
    %v250 = vunpack.c.l.b16 %v148
    %v251 = vunpack.c.h.b16 %v148
    %v252 = vunpack.c.l.b16 %v149
    %v253 = vunpack.c.h.b16 %v149
    %v254 = vunpack.c.l.b16 %v150
    %v255 = vunpack.c.h.b16 %v150
    %v256 = vunpack.c.l.b16 %v151
    %v257 = vunpack.c.h.b16 %v151
    %v258 = vunpack.c.l.b16 %v152
    %v259 = vunpack.c.h.b16 %v152
    %v260 = vunpack.c.l.b16 %v153
    %v261 = vunpack.c.h.b16 %v153
    %v262 = vpack.c.b16 %v200, %v198
    %v263 = vpack.c.b16 %v201, %v199
    %v264 = vpack.c.b16 %v204, %v202
    %v265 = vpack.c.b16 %v205, %v203
    %v266 = vpack.c.b16 %v208, %v206
    %v267 = vpack.c.b16 %v209, %v207
    %v268 = vpack.c.b16 %v212, %v210
    %v269 = vpack.c.b16 %v213, %v211
    %v270 = vpack.c.b16 %v216, %v214
    %v271 = vpack.c.b16 %v217, %v215
    %v272 = vpack.c.b16 %v220, %v218
    %v273 = vpack.c.b16 %v221, %v219
    %v274 = vpack.c.b16 %v224, %v222
    %v275 = vpack.c.b16 %v225, %v223
    %v276 = vpack.c.b16 %v228, %v226
    %v277 = vpack.c.b16 %v229, %v227
    %v278 = vpack.c.b16 %v232, %v230
    %v279 = vpack.c.b16 %v233, %v231
    %v280 = vpack.c.b16 %v236, %v234
    %v281 = vpack.c.b16 %v237, %v235
    %v282 = vpack.c.b16 %v240, %v238
    %v283 = vpack.c.b16 %v241, %v239
    %v284 = vpack.c.b16 %v244, %v242
    %v285 = vpack.c.b16 %v245, %v243
    %v286 = vpack.c.b16 %v248, %v246
    %v287 = vpack.c.b16 %v249, %v247
    %v288 = vpack.c.b16 %v252, %v250
    %v289 = vpack.c.b16 %v253, %v251
    %v290 = vpack.c.b16 %v256, %v254
    %v291 = vpack.c.b16 %v257, %v255
    %v292 = vpack.c.b16 %v260, %v258
    %v293 = vpack.c.b16 %v261, %v259
    %326 = vmatprep.subr.bf16.mxu0 %v263
    %327 = vmatpush1.bf16.msra.mxu0 %v262
    %328 = vmatprep.subr.bf16.mxu0 %v265
    %329 = vmatpush1.bf16.msra.mxu0 %v264
    %330 = vmatprep.subr.bf16.mxu0 %v267
    %331 = vmatpush1.bf16.msra.mxu0 %v266
    %332 = vmatprep.subr.bf16.mxu0 %v269
    %333 = vmatpush1.bf16.msra.mxu0 %v268
    %334 = vmatprep.subr.bf16.mxu0 %v271
    %335 = vmatpush1.bf16.msra.mxu0 %v270
    %336 = vmatprep.subr.bf16.mxu0 %v273
    %337 = vmatpush1.bf16.msra.mxu0 %v272
    %338 = vmatprep.subr.bf16.mxu0 %v275
    %339 = vmatpush1.bf16.msra.mxu0 %v274
    %340 = vmatprep.subr.bf16.mxu0 %v277
    %341 = vmatpush1.bf16.msra.mxu0 %v276
    %342 = vmatprep.subr.bf16.mxu0 %v279
    %343 = vmatpush1.bf16.msra.mxu0 %v278
    %344 = vmatprep.subr.bf16.mxu0 %v281
    %345 = vmatpush1.bf16.msra.mxu0 %v280
    %346 = vmatprep.subr.bf16.mxu0 %v283
    %347 = vmatpush1.bf16.msra.mxu0 %v282
    %348 = vmatprep.subr.bf16.mxu0 %v285
    %349 = vmatpush1.bf16.msra.mxu0 %v284
    %350 = vmatprep.subr.bf16.mxu0 %v287
    %351 = vmatpush1.bf16.msra.mxu0 %v286
    %352 = vmatprep.subr.bf16.mxu0 %v289
    %353 = vmatpush1.bf16.msra.mxu0 %v288
    %354 = vmatprep.subr.bf16.mxu0 %v291
    %355 = vmatpush1.bf16.msra.mxu0 %v290
    %356 = vmatprep.subr.bf16.mxu0 %v293
    %357 = vmatpush1.bf16.msra.mxu0 %v292
    %358 = vmatprep.mubr.bf16.mxu0 %v121
    %359 = vmatmul.mubr.bf16.gmra.mrb[0].mxu0 %v120
    %v360 = vpop.f32.mrb[0].mxu0
    %v361 = vadd.f32 %v159, %v360
    %v362 = vpop.f32.mrb[0].mxu0
    %v363 = vadd.f32 %v163, %v362
    %v364 = vpop.f32.mrb[0].mxu0
    %v365 = vpop.f32.mrb[0].mxu0
    %366 = vdwg.mxu0
    %v367 = vmax.f32 %v361, 0.0
    %v368 = vmax.f32 %v363, 0.0
    %v369 = vpack.c.bf16 %v367, %v367
    %v370 = vpack.c.bf16 %v368, %v368
    %v371 = vld [vmem:[%s6] sm:$0xf]
    %v372 = vld [vmem:[%s6 + $0x4] sm:$0xf]
    %v373 = vld [vmem:[%s6 + $0x8] sm:$0xf]
    %v374 = vld [vmem:[%s6 + $0xc] sm:$0xf]
    %v375 = vld [vmem:[%s6 + $0x10] sm:$0xf]
    %v376 = vld [vmem:[%s6 + $0x14] sm:$0xf]
    %v377 = vld [vmem:[%s6 + $0x18] sm:$0xf]
    %v378 = vld [vmem:[%s6 + $0x1c] sm:$0xf]
    %v379 = vld [vmem:[%s6 + $0x20] sm:$0xf]
    %v380 = vld [vmem:[%s6 + $0x24] sm:$0xf]
    %v381 = vld [vmem:[%s6 + $0x28] sm:$0xf]
    %v382 = vld [vmem:[%s6 + $0x2c] sm:$0xf]
    %v383 = vld [vmem:[%s6 + $0x30] sm:$0xf]
    %v384 = vld [vmem:[%s6 + $0x34] sm:$0xf]
    %v385 = vld [vmem:[%s6 + $0x38] sm:$0xf]
    %v386 = vld [vmem:[%s6 + $0x3c] sm:$0xf]
    %v387 = vld [vmem:[%s6 + $0x40] sm:$0xf]
    %v388 = vld [vmem:[%s6 + $0x44] sm:$0xf]
    %v389 = vld [vmem:[%s6 + $0x48] sm:$0xf]
    %v390 = vld [vmem:[%s6 + $0x4c] sm:$0xf]
    %v391 = vld [vmem:[%s6 + $0x50] sm:$0xf]
    %v392 = vld [vmem:[%s6 + $0x54] sm:$0xf]
    %v393 = vld [vmem:[%s6 + $0x58] sm:$0xf]
    %v394 = vld [vmem:[%s6 + $0x5c] sm:$0xf]
    %v395 = vld [vmem:[%s6 + $0x60] sm:$0xf]
    %v396 = vld [vmem:[%s6 + $0x64] sm:$0xf]
    %v397 = vld [vmem:[%s6 + $0x68] sm:$0xf]
    %v398 = vld [vmem:[%s6 + $0x6c] sm:$0xf]
    %v399 = vld [vmem:[%s6 + $0x70] sm:$0xf]
    %v400 = vld [vmem:[%s6 + $0x74] sm:$0xf]
    %v401 = vld [vmem:[%s6 + $0x78] sm:$0xf]
    %v402 = vld [vmem:[%s6 + $0x7c] sm:$0xf]
    %v403 = vld [vmem:[%s7] sm:$0x1]
    %v405 = vlaneseq
    %v406 = vshrl.u32 %v405, 7
    %v407 = vsub.s32 0, %v406
    %v408 = vrot.slane %v403, %v407
    %v442 = vunpack.c.l.b16 %v371
    %v443 = vunpack.c.l.b16 %v372
    %v444 = vunpack.c.l.b16 %v373
    %v445 = vunpack.c.l.b16 %v374
    %v446 = vunpack.c.l.b16 %v375
    %v447 = vunpack.c.l.b16 %v376
    %v448 = vunpack.c.l.b16 %v377
    %v449 = vunpack.c.l.b16 %v378
    %v450 = vunpack.c.l.b16 %v379
    %v451 = vunpack.c.l.b16 %v380
    %v452 = vunpack.c.l.b16 %v381
    %v453 = vunpack.c.l.b16 %v382
    %v454 = vunpack.c.l.b16 %v383
    %v455 = vunpack.c.l.b16 %v384
    %v456 = vunpack.c.l.b16 %v385
    %v457 = vunpack.c.l.b16 %v386
    %v458 = vunpack.c.l.b16 %v387
    %v459 = vunpack.c.l.b16 %v388
    %v460 = vunpack.c.l.b16 %v389
    %v461 = vunpack.c.l.b16 %v390
    %v462 = vunpack.c.l.b16 %v391
    %v463 = vunpack.c.l.b16 %v392
    %v464 = vunpack.c.l.b16 %v393
    %v465 = vunpack.c.l.b16 %v394
    %v466 = vunpack.c.l.b16 %v395
    %v467 = vunpack.c.l.b16 %v396
    %v468 = vunpack.c.l.b16 %v397
    %v469 = vunpack.c.l.b16 %v398
    %v470 = vunpack.c.l.b16 %v399
    %v471 = vunpack.c.l.b16 %v400
    %v472 = vunpack.c.l.b16 %v401
    %v473 = vunpack.c.l.b16 %v402
    %v474 = vpack.c.b16 %v443, %v442
    %v475 = vpack.c.b16 %v445, %v444
    %v476 = vpack.c.b16 %v447, %v446
    %v477 = vpack.c.b16 %v449, %v448
    %v478 = vpack.c.b16 %v451, %v450
    %v479 = vpack.c.b16 %v453, %v452
    %v480 = vpack.c.b16 %v455, %v454
    %v481 = vpack.c.b16 %v457, %v456
    %v482 = vpack.c.b16 %v459, %v458
    %v483 = vpack.c.b16 %v461, %v460
    %v484 = vpack.c.b16 %v463, %v462
    %v485 = vpack.c.b16 %v465, %v464
    %v486 = vpack.c.b16 %v467, %v466
    %v487 = vpack.c.b16 %v469, %v468
    %v488 = vpack.c.b16 %v471, %v470
    %v489 = vpack.c.b16 %v473, %v472
    %506 = vmatprep.subr.bf16.mxu0 0
    %507 = vmatpush1.bf16.msra.mxu0 %v474
    %508 = vmatprep.subr.bf16.mxu0 0
    %509 = vmatpush1.bf16.msra.mxu0 %v475
    %510 = vmatprep.subr.bf16.mxu0 0
    %511 = vmatpush1.bf16.msra.mxu0 %v476
    %512 = vmatprep.subr.bf16.mxu0 0
    %513 = vmatpush1.bf16.msra.mxu0 %v477
    %514 = vmatprep.subr.bf16.mxu0 0
    %515 = vmatpush1.bf16.msra.mxu0 %v478
    %516 = vmatprep.subr.bf16.mxu0 0
    %517 = vmatpush1.bf16.msra.mxu0 %v479
    %518 = vmatprep.subr.bf16.mxu0 0
    %519 = vmatpush1.bf16.msra.mxu0 %v480
    %520 = vmatprep.subr.bf16.mxu0 0
    %521 = vmatpush1.bf16.msra.mxu0 %v481
    %522 = vmatprep.subr.bf16.mxu0 0
    %523 = vmatpush1.bf16.msra.mxu0 %v482
    %524 = vmatprep.subr.bf16.mxu0 0
    %525 = vmatpush1.bf16.msra.mxu0 %v483
    %526 = vmatprep.subr.bf16.mxu0 0
    %527 = vmatpush1.bf16.msra.mxu0 %v484
    %528 = vmatprep.subr.bf16.mxu0 0
    %529 = vmatpush1.bf16.msra.mxu0 %v485
    %530 = vmatprep.subr.bf16.mxu0 0
    %531 = vmatpush1.bf16.msra.mxu0 %v486
    %532 = vmatprep.subr.bf16.mxu0 0
    %533 = vmatpush1.bf16.msra.mxu0 %v487
    %534 = vmatprep.subr.bf16.mxu0 0
    %535 = vmatpush1.bf16.msra.mxu0 %v488
    %536 = vmatprep.subr.bf16.mxu0 0
    %537 = vmatpush1.bf16.msra.mxu0 %v489
    %538 = vmatprep.mubr.bf16.mxu0 %v370
    %539 = vmatmul.mubr.bf16.gmra.mrb[0].mxu0 %v369
    %v540 = vpop.f32.mrb[0].mxu0
    %v541 = vadd.f32 %v408, %v540
    %v542 = vpop.f32.mrb[0].mxu0
    %v543 = vpop.f32.mrb[0].mxu0
    %v544 = vpop.f32.mrb[0].mxu0
    %545 = vdwg.mxu0
    %v546 = vtanh.pop %v541
    %v547 = vstv %s46
    %v548 = vmul.f32 %v547, %v546
    %vm549 = vcmask 64512
    %550 = vst.msk [vmem:[#allocation6] sm:$0xff] %vm549, %v548
    // Predicated region
    $region38: #{tpu_custom_call.1} parent=1 // pred_check
      _
    $region39: #{tpu_custom_call.1} parent=1 // pred_check_branch
      %552 = sbr.rel (0) target = $region41
    $region40: #{tpu_custom_call.1} parent=1 // pred_region
      %s554 = ssub.s32 128, 128
      %555 = vsyncadd [#allocation5], %s554
      %s557 = sshll.u32 [#allocation6], 4
      %s558 = int_to_ptr.vmem [resolvable:$true] %s557
      %560 = dma.vmem_to_hbm [thread:$0]  %s558, 128, %s8, [#allocation5]
    $region41: #{tpu_custom_call.1} parent=1 // pred_fallthru
      _
    // Predicated region
    $region42: #{tpu_custom_call.1} parent=1 // pred_check
      _
    $region43: #{tpu_custom_call.1} parent=1 // pred_check_branch
      %562 = sbr.rel (0) target = $region45
    $region44: #{tpu_custom_call.1} parent=1 // pred_region
      %563 = dma.done [#allocation5], 128
    $region45: #{tpu_custom_call.1} parent=1 // pred_fallthru
      _
    %564 = vsyncpa [#allocation4], 1
    %565 = vsyncpa [#allocation5], 1

</llo_original>
